<compile_context>
chip_gen: v7x
topology: tpu7x:2x2x1
jax: 0.10.0
libtpu: 0.0.40
codegen_flags: <defaults>
</compile_context>

<pallas_src>
import functools

import jax
import jax.numpy as jnp
from jax.experimental import pallas as pl
from jax.experimental.pallas import tpu as pltpu

_MIB = 1024 * 1024


def _triplet_kernel(a_ref, p_ref, n_ref, out_ref, acc_ref, *,
                    margin, batch, tile_b, tiles_per_core, needs_mask):
    c = pl.program_id(0)      # core-parallel axis
    i = pl.program_id(1)      # sequential batch-tile (reduction) axis

    @pl.when(i == 0)
    def _init():
        acc_ref[...] = jnp.zeros_like(acc_ref)

    # Stream tiles in native dtype; compute in f32.
    a = a_ref[...].astype(jnp.float32)
    p = p_ref[...].astype(jnp.float32)
    n = n_ref[...].astype(jnp.float32)

    # Fused distance difference:
    #   ||a-p||^2 - ||a-n||^2 == sum((n - p) * (2a - p - n), axis=1)
    # -> one cross-lane reduction instead of two, fewer live (TB, D) temps.
    diff = jnp.sum((n - p) * (2.0 * a - p - n), axis=1, keepdims=True)
    losses = jnp.maximum(diff + jnp.float32(margin), 0.0)          # (TB, 1)

    if needs_mask:
        # Mask rows past the true batch size (ragged last tile and/or padded
        # grid steps whose block index was clamped). Must stay AFTER the loss
        # computation so OOB garbage is zeroed with `where`, not arithmetic.
        t = c * tiles_per_core + i          # logical (unclamped) tile index
        rows = jax.lax.broadcasted_iota(jnp.int32, losses.shape, 0) + t * tile_b
        losses = jnp.where(rows < batch, losses, 0.0)

    # Vector accumulator: elementwise add only; no per-step scalar reduce/RMW.
    acc_ref[...] += losses

    @pl.when(i == pl.num_programs(1) - 1)
    def _finalize():
        # Broadcast the per-core partial sum over the whole lane-dense block.
        out_ref[...] = jnp.zeros_like(out_ref) + jnp.sum(acc_ref[...])


def _vmem_capacity_bytes():
    try:
        return int(pltpu.get_tpu_info().vmem_capacity_bytes)
    except Exception:
        return 64 * _MIB      # conservative fallback (v7x-sized VMEM)


def _pick_batch_tile(batch, dim, itemsize, vmem_capacity):
    """Largest batch tile whose VMEM footprint fits the per-generation budget.

    Layout-aware: the feature dim occupies a multiple of 128 lanes, and ~3 live
    f32 (TB, Dpad) upcast/intermediate temporaries are charged on top of the
    3 inputs x 2 double-buffered native-dtype DMA tiles.
    """
    dpad = max(((dim + 127) // 128) * 128, 128)
    sub = max(8, 32 // itemsize)          # packed sublane: 8/f32, 16/bf16, 32/int8
    bytes_per_row = 3 * 2 * dpad * itemsize + 3 * dpad * 4

    if vmem_capacity >= 96 * _MIB:        # 128 MiB parts (v5e / v6e)
        budget = 48 * _MIB
    else:                                 # 64 MiB parts (v7x): keep total < ~48 MiB
        budget = 28 * _MIB

    tb = budget // bytes_per_row
    if tb >= batch:
        return batch                      # full batch along dim 0: always legal
    if tb < sub:
        # TODO(synk): for very large D even the minimal (sub, D) tile can exceed
        # the budget; tiling the feature dim as well would be needed there.
        return sub
    return (tb // sub) * sub


def triplet_loss(anchor, positive, negative, margin=0.1,
                 block_rows=None, num_cores=2):
    """Pallas TPU implementation of TripletLoss.forward for (B, D) inputs."""
    B, D = anchor.shape
    assert positive.shape == (B, D) and negative.shape == (B, D)

    itemsize = jnp.dtype(anchor.dtype).itemsize
    vmem_capacity = _vmem_capacity_bytes()
    tb = block_rows if block_rows is not None else _pick_batch_tile(
        B, D, itemsize, vmem_capacity)
    tb = min(tb, B)

    n_tiles = pl.cdiv(B, tb)
    nc = max(1, min(num_cores, n_tiles))       # core split (v7x: 2 TensorCores)
    tiles_per_core = pl.cdiv(n_tiles, nc)
    needs_mask = (nc * tiles_per_core * tb != B)

    dpad = max(((D + 127) // 128) * 128, 128)
    est_footprint = 3 * 2 * tb * dpad * itemsize + 3 * tb * dpad * 4 + tb * 4
    vmem_limit = int(min(vmem_capacity * 3 // 4,
                         max(est_footprint + 8 * _MIB, 32 * _MIB)))

    kernel = functools.partial(
        _triplet_kernel, margin=float(margin), batch=B, tile_b=tb,
        tiles_per_core=tiles_per_core, needs_mask=needs_mask)

    def in_map(c, i):
        # Clamp so padded grid steps re-read the last valid tile; those rows are
        # masked to zero inside the kernel.
        return (jnp.minimum(c * tiles_per_core + i, n_tiles - 1), 0)

    in_spec = pl.BlockSpec((tb, D), in_map)

    out = pl.pallas_call(
        kernel,
        out_shape=jax.ShapeDtypeStruct((nc, 8, 128), jnp.float32),
        grid_spec=pltpu.PrefetchScalarGridSpec(
            num_scalar_prefetch=0,
            grid=(nc, tiles_per_core),
            in_specs=[in_spec, in_spec, in_spec],
            out_specs=pl.BlockSpec((1, 8, 128), lambda c, i: (c, 0, 0)),
            scratch_shapes=[pltpu.VMEM((tb, 1), jnp.float32)],
        ),
        compiler_params=pltpu.CompilerParams(
            dimension_semantics=("parallel", "arbitrary"),
            vmem_limit_bytes=vmem_limit,
        ),
        cost_estimate=pl.CostEstimate(
            flops=7 * B * D,
            transcendentals=0,
            bytes_accessed=3 * B * D * itemsize + nc * 8 * 128 * 4,
        ),
    )(anchor, positive, negative)

    # Combine per-core partial sums and take the mean in the wrapper.
    return jnp.sum(out[:, 0, 0]) / B


def _ref_loss(anchor, positive, negative, margin):
    dp = jnp.sum((anchor - positive) ** 2, axis=1)
    dn = jnp.sum((anchor - negative) ** 2, axis=1)
    return jnp.mean(jnp.maximum(dp - dn + margin, 0.0))


if __name__ == "__main__":
    key = jax.random.PRNGKey(0)
    ks = jax.random.split(key, 9)

    # Case 1: small f32 batch (matches the module's expected usage).
    B, D = 8, 32
    anchor = jax.random.normal(ks[0], (B, D), dtype=jnp.float32)
    positive = jax.random.normal(ks[1], (B, D), dtype=jnp.float32)
    negative = jax.random.normal(ks[2], (B, D), dtype=jnp.float32)

    loss = triplet_loss(anchor, positive, negative, margin=0.1)
    jax.block_until_ready(loss)
    ref = _ref_loss(anchor, positive, negative, 0.1)
    assert jnp.allclose(loss, ref, rtol=1e-4, atol=1e-5), (loss, ref)

    # Case 2: ragged batch + forced small tile + 2-way core split:
    # B=20, TB=8 -> 3 real tiles over a (2, 2) grid (clamped + masked tail).
    B2 = 20
    a2 = jax.random.normal(ks[3], (B2, D), dtype=jnp.float32)
    p2 = jax.random.normal(ks[4], (B2, D), dtype=jnp.float32)
    n2 = jax.random.normal(ks[5], (B2, D), dtype=jnp.float32)

    loss2 = triplet_loss(a2, p2, n2, margin=0.1, block_rows=8, num_cores=2)
    jax.block_until_ready(loss2)
    ref2 = _ref_loss(a2, p2, n2, 0.1)
    assert jnp.allclose(loss2, ref2, rtol=1e-4, atol=1e-5), (loss2, ref2)

    # Case 3: bf16 inputs (native-dtype DMA, in-kernel f32 upcast), D not a
    # multiple of 128 (exercises the lane-padded budget math).
    B3, D3 = 64, 100
    a3 = jax.random.normal(ks[6], (B3, D3), dtype=jnp.bfloat16)
    p3 = jax.random.normal(ks[7], (B3, D3), dtype=jnp.bfloat16)
    n3 = jax.random.normal(ks[8], (B3, D3), dtype=jnp.bfloat16)

    loss3 = triplet_loss(a3, p3, n3, margin=0.1)
    jax.block_until_ready(loss3)
    ref3 = _ref_loss(a3.astype(jnp.float32), p3.astype(jnp.float32),
                     n3.astype(jnp.float32), 0.1)
    assert jnp.allclose(loss3, ref3, rtol=2e-3, atol=2e-3), (loss3, ref3)

    print("KERNEL_OK")
</pallas_src>

<mosaic_0001>
module attributes {stable_mosaic.version = 11 : i64} {
  func.func @_triplet_kernel(%arg0: i32, %arg1: i32, %arg2: memref<8x32xf32, #tpu.memory_space<vmem>>, %arg3: memref<8x32xf32, #tpu.memory_space<vmem>>, %arg4: memref<8x32xf32, #tpu.memory_space<vmem>>, %arg5: memref<1x8x128xf32, #tpu.memory_space<vmem>>, %arg6: memref<8x1xf32, #tpu.memory_space<vmem>>) attributes {dimension_semantics = [#tpu.dimension_semantics<parallel>, #tpu.dimension_semantics<arbitrary>], iteration_bounds = array<i64: 1, 1>, scalar_prefetch = 0 : i64, scratch_operands = 1 : i64, tpu.core_type = #tpu.core_type<tc>, window_params = [{transform_indices = @transform_0, window_bounds = array<i64: 8, 32>}, {transform_indices = @transform_1, window_bounds = array<i64: 8, 32>}, {transform_indices = @transform_2, window_bounds = array<i64: 8, 32>}, {transform_indices = @transform_3, window_bounds = array<i64: 1, 8, 128>}]} {
    %c0_i32 = arith.constant 0 : i32
    %0 = arith.cmpi eq, %arg1, %c0_i32 : i32
    %1 = arith.extui %0 : i1 to i32
    %c0_i32_0 = arith.constant 0 : i32
    %2 = arith.cmpi ne, %1, %c0_i32_0 : i32
    scf.if %2 {
      %cst_15 = arith.constant 0.000000e+00 : f32
      %24 = vector.broadcast %cst_15 : f32 to vector<8x1xf32>
      %c0_16 = arith.constant 0 : index
      %c0_17 = arith.constant 0 : index
      %25 = vector.load %arg6[%c0_16, %c0_17] : memref<8x1xf32, #tpu.memory_space<vmem>>, vector<8x1xf32>
      tpu.vector_store %arg6[%c0_16, %c0_17], %24 {strides = array<i32>} : memref<8x1xf32, #tpu.memory_space<vmem>>, vector<8x1xf32>,
    } else {
    }
    %c0 = arith.constant 0 : index
    %c0_1 = arith.constant 0 : index
    %3 = vector.load %arg2[%c0, %c0_1] : memref<8x32xf32, #tpu.memory_space<vmem>>, vector<8x32xf32>
    %c0_2 = arith.constant 0 : index
    %c0_3 = arith.constant 0 : index
    %4 = vector.load %arg3[%c0_2, %c0_3] : memref<8x32xf32, #tpu.memory_space<vmem>>, vector<8x32xf32>
    %c0_4 = arith.constant 0 : index
    %c0_5 = arith.constant 0 : index
    %5 = vector.load %arg4[%c0_4, %c0_5] : memref<8x32xf32, #tpu.memory_space<vmem>>, vector<8x32xf32>
    %6 = arith.subf %5, %4 : vector<8x32xf32>
    %cst = arith.constant 2.000000e+00 : f32
    %7 = vector.broadcast %cst : f32 to vector<8x32xf32>
    %8 = arith.mulf %7, %3 : vector<8x32xf32>
    %9 = arith.subf %8, %4 : vector<8x32xf32>
    %10 = arith.subf %9, %5 : vector<8x32xf32>
    %11 = arith.mulf %6, %10 : vector<8x32xf32>
    %cst_6 = arith.constant dense<0.000000e+00> : vector<8xf32>
    %12 = vector.multi_reduction <add>, %11, %cst_6 [1] : vector<8x32xf32> to vector<8xf32>
    %13 = vector.shape_cast %12 : vector<8xf32> to vector<8x1xf32>
    %cst_7 = arith.constant 1.000000e-01 : f32
    %14 = vector.broadcast %cst_7 : f32 to vector<8x1xf32>
    %15 = arith.addf %13, %14 : vector<8x1xf32>
    %cst_8 = arith.constant 0.000000e+00 : f32
    %16 = vector.broadcast %cst_8 : f32 to vector<8x1xf32>
    %17 = arith.maximumf %15, %16 : vector<8x1xf32>
    %c0_9 = arith.constant 0 : index
    %c0_10 = arith.constant 0 : index
    %18 = vector.load %arg6[%c0_9, %c0_10] : memref<8x1xf32, #tpu.memory_space<vmem>>, vector<8x1xf32>
    %19 = arith.addf %18, %17 : vector<8x1xf32>
    %c0_11 = arith.constant 0 : index
    %c0_12 = arith.constant 0 : index
    %20 = vector.load %arg6[%c0_11, %c0_12] : memref<8x1xf32, #tpu.memory_space<vmem>>, vector<8x1xf32>
    tpu.vector_store %arg6[%c0_11, %c0_12], %19 {strides = array<i32>} : memref<8x1xf32, #tpu.memory_space<vmem>>, vector<8x1xf32>,
    %c0_i32_13 = arith.constant 0 : i32
    %21 = arith.cmpi eq, %arg1, %c0_i32_13 : i32
    %22 = arith.extui %21 : i1 to i32
    %c0_i32_14 = arith.constant 0 : i32
    %23 = arith.cmpi ne, %22, %c0_i32_14 : i32
    scf.if %23 {
      %cst_15 = arith.constant 0.000000e+00 : f32
      %24 = vector.broadcast %cst_15 : f32 to vector<1x8x128xf32>
      %c0_16 = arith.constant 0 : index
      %c0_17 = arith.constant 0 : index
      %25 = vector.load %arg6[%c0_16, %c0_17] : memref<8x1xf32, #tpu.memory_space<vmem>>, vector<8x1xf32>
      %26 = vector.shape_cast %25 : vector<8x1xf32> to vector<1x8x1xf32>
      %cst_18 = arith.constant dense<0.000000e+00> : vector<1xf32>
      %27 = vector.multi_reduction <add>, %26, %cst_18 [1, 2] : vector<1x8x1xf32> to vector<1xf32>
      %28 = vector.shape_cast %27 : vector<1xf32> to vector<1x1x1xf32>
      %29 = vector.extract %28[0, 0, 0] : f32 from vector<1x1x1xf32>
      %30 = vector.broadcast %29 : f32 to vector<1x8x128xf32>
      %31 = arith.addf %24, %30 : vector<1x8x128xf32>
      %c0_19 = arith.constant 0 : index
      %c0_20 = arith.constant 0 : index
      %c0_21 = arith.constant 0 : index
      %32 = vector.load %arg5[%c0_19, %c0_20, %c0_21] : memref<1x8x128xf32, #tpu.memory_space<vmem>>, vector<1x8x128xf32>
      tpu.vector_store %arg5[%c0_19, %c0_20, %c0_21], %31 {strides = array<i32>} : memref<1x8x128xf32, #tpu.memory_space<vmem>>, vector<1x8x128xf32>,
    } else {
    }
    return
  }
  func.func @transform_0(%arg0: i32, %arg1: i32) -> (i32, i32) {
    %c1_i32 = arith.constant 1 : i32
    %0 = arith.muli %arg0, %c1_i32 : i32
    %1 = arith.addi %0, %arg1 : i32
    %c0_i32 = arith.constant 0 : i32
    %2 = arith.minsi %1, %c0_i32 : i32
    %c0_i32_0 = arith.constant 0 : i32
    %c0_i32_1 = arith.constant 0 : i32
    return %2, %c0_i32_0 : i32, i32
  }
  func.func @transform_1(%arg0: i32, %arg1: i32) -> (i32, i32) {
    %c1_i32 = arith.constant 1 : i32
    %0 = arith.muli %arg0, %c1_i32 : i32
    %1 = arith.addi %0, %arg1 : i32
    %c0_i32 = arith.constant 0 : i32
    %2 = arith.minsi %1, %c0_i32 : i32
    %c0_i32_0 = arith.constant 0 : i32
    %c0_i32_1 = arith.constant 0 : i32
    return %2, %c0_i32_0 : i32, i32
  }
  func.func @transform_2(%arg0: i32, %arg1: i32) -> (i32, i32) {
    %c1_i32 = arith.constant 1 : i32
    %0 = arith.muli %arg0, %c1_i32 : i32
    %1 = arith.addi %0, %arg1 : i32
    %c0_i32 = arith.constant 0 : i32
    %2 = arith.minsi %1, %c0_i32 : i32
    %c0_i32_0 = arith.constant 0 : i32
    %c0_i32_1 = arith.constant 0 : i32
    return %2, %c0_i32_0 : i32, i32
  }
  func.func @transform_3(%arg0: i32, %arg1: i32) -> (i32, i32, i32) {
    %c0_i32 = arith.constant 0 : i32
    %c0_i32_0 = arith.constant 0 : i32
    %c0_i32_1 = arith.constant 0 : i32
    return %arg0, %c0_i32, %c0_i32_0 : i32, i32, i32
  }
}

</mosaic_0001>

<llo_original>
// kernel: tpu_custom_call.1
$region0: #{tpu_custom_call.1}
  #allocation0 [shape = 'u32[]', space=smem, size = 0x4, offset = 0x4, fixed_abs, tag = 'smem constant byte address 0x4 - core index']
  #allocation1 [shape = 'u32[144,128]{1,0:T(1,128)}', space=vmem, size = 0x12000, scoped, tag = 'internal scratch']
  #allocation2 [shape = 'f32[8,1]{1,0:T(8,128)}', space=vmem, size = 0x1000, scoped, tag = 'scratch operand']
  %s0 = inlined_call_operand.hbm [shape: f32[8,32], index: 0, kind: input, shape index: {}]
  %s1 = inlined_call_operand.hbm [shape: f32[8,32], index: 1, kind: input, shape index: {}]
  %s2 = inlined_call_operand.hbm [shape: f32[8,32], index: 2, kind: input, shape index: {}]
  %s3 = inlined_call_operand.hbm [shape: f32[1,8,128], index: 3, kind: output, shape index: {}]
  %s4 = sld [smem:[#allocation0]]
  $region42: #{tpu_custom_call.1} parent=0
    _
  %s6 = ssub.s32 1, %s4
  %s7 = scalar_select 0, %s6, %s4
  $region1: #{tpu_custom_call.1} parent=0
    #allocation3 [shape = 'u8[4096]{0}', space=vmem, size = 0x1000, scoped, tag = 'input window, operand 0, single buffered']
    #allocation4 [shape = 's32[1]{0}', space=sflag, size = 0x4, scoped, tag = 'scoped memory for tpu_custom_call.1']
    #allocation5 [shape = 's32[1]{0}', space=sflag, size = 0x4, scoped, tag = 'scoped memory for tpu_custom_call.1']
    #allocation6 [shape = 'u8[4096]{0}', space=vmem, size = 0x1000, scoped, tag = 'input window, operand 1, single buffered']
    #allocation7 [shape = 's32[1]{0}', space=sflag, size = 0x4, scoped, tag = 'scoped memory for tpu_custom_call.1']
    #allocation8 [shape = 'u8[4096]{0}', space=vmem, size = 0x1000, scoped, tag = 'input window, operand 2, single buffered']
    #allocation9 [shape = 'u8[4096]{0}', space=vmem, size = 0x1000, scoped, tag = 'output window, operand 0, single buffered']
    %8 = vsyncpa [#allocation4], 0
    %9 = vsyncpa [#allocation7], 0
    %10 = vsyncpa [#allocation5], 0
    // Predicated region
    $region2: #{tpu_custom_call.1} parent=1 // pred_check
      _
    $region3: #{tpu_custom_call.1} parent=1 // pred_check_branch
      %12 = sbr.rel (0) target = $region5
    $region4: #{tpu_custom_call.1} parent=1 // pred_region
      %s13 = sadd.s32 0, 0
      %p14 = scmp.lt.s32.totalorder %s13, 0
      %s15 = scalar_select %p14, %s13, 0
      %s17 = ssub.s32 128, 128
      %18 = vsyncadd [#allocation4], %s17
      %s19 = smul.addr %s15, 128
      %s20 = scalar_lea.hbm %s0, %s19
      %s22 = sshll.u32 [#allocation3], 4
      %s23 = int_to_ptr.vmem [resolvable:$true] %s22
      %25 = dma.hbm_to_vmem [thread:$0]  %s20, 128, %s23, [#allocation4]
    $region5: #{tpu_custom_call.1} parent=1 // pred_fallthru
      _
    // Predicated region
    $region6: #{tpu_custom_call.1} parent=1 // pred_check
      _
    $region7: #{tpu_custom_call.1} parent=1 // pred_check_branch
      %27 = sbr.rel (0) target = $region9
    $region8: #{tpu_custom_call.1} parent=1 // pred_region
      %s28 = sadd.s32 0, 0
      %p29 = scmp.lt.s32.totalorder %s28, 0
      %s30 = scalar_select %p29, %s28, 0
      %s32 = ssub.s32 128, 128
      %33 = vsyncadd [#allocation7], %s32
      %s34 = smul.addr %s30, 128
      %s35 = scalar_lea.hbm %s1, %s34
      %s37 = sshll.u32 [#allocation6], 4
      %s38 = int_to_ptr.vmem [resolvable:$true] %s37
      %40 = dma.hbm_to_vmem [thread:$0]  %s35, 128, %s38, [#allocation7]
    $region9: #{tpu_custom_call.1} parent=1 // pred_fallthru
      _
    // Predicated region
    $region10: #{tpu_custom_call.1} parent=1 // pred_check
      _
    $region11: #{tpu_custom_call.1} parent=1 // pred_check_branch
      %42 = sbr.rel (0) target = $region13
    $region12: #{tpu_custom_call.1} parent=1 // pred_region
      %s43 = sadd.s32 0, 0
      %p44 = scmp.lt.s32.totalorder %s43, 0
      %s45 = scalar_select %p44, %s43, 0
      %s47 = ssub.s32 128, 128
      %48 = vsyncadd [#allocation7], %s47
      %s49 = smul.addr %s45, 128
      %s50 = scalar_lea.hbm %s2, %s49
      %s52 = sshll.u32 [#allocation8], 4
      %s53 = int_to_ptr.vmem [resolvable:$true] %s52
      %55 = dma.hbm_to_vmem [thread:$0]  %s50, 128, %s53, [#allocation7]
    $region13: #{tpu_custom_call.1} parent=1 // pred_fallthru
      _
    // Predicated region
    $region14: #{tpu_custom_call.1} parent=1 // pred_check
      _
    $region15: #{tpu_custom_call.1} parent=1 // pred_check_branch
      %57 = sbr.rel (0) target = $region17
    $region16: #{tpu_custom_call.1} parent=1 // pred_region
      %58 = dma.done [#allocation4], 128
    $region17: #{tpu_custom_call.1} parent=1 // pred_fallthru
      _
    // Predicated region
    $region18: #{tpu_custom_call.1} parent=1 // pred_check
      _
    $region19: #{tpu_custom_call.1} parent=1 // pred_check_branch
      %60 = sbr.rel (0) target = $region21
    $region20: #{tpu_custom_call.1} parent=1 // pred_region
      %61 = dma.done [#allocation7], 128
    $region21: #{tpu_custom_call.1} parent=1 // pred_fallthru
      _
    // Predicated region
    $region22: #{tpu_custom_call.1} parent=1 // pred_check
      _
    $region23: #{tpu_custom_call.1} parent=1 // pred_check_branch
      %63 = sbr.rel (0) target = $region25
    $region24: #{tpu_custom_call.1} parent=1 // pred_region
      %64 = dma.done [#allocation7], 128
    $region25: #{tpu_custom_call.1} parent=1 // pred_fallthru
      _
    %s65 = sadd.s32 0, 0
    %p66 = scmp.lt.s32.totalorder %s65, 0
    %s67 = scalar_select %p66, %s65, 0
    %s68 = sadd.s32 0, 0
    %p69 = scmp.lt.s32.totalorder %s68, 0
    %s70 = scalar_select %p69, %s68, 0
    %s71 = sadd.s32 0, 0
    %p72 = scmp.lt.s32.totalorder %s71, 0
    %s73 = scalar_select %p72, %s71, 0
    %p74 = scmp.eq.s32.totalorder 0, 0
    // Predicated region
    $region26: #{tpu_custom_call.1} parent=1 // pred_check
      %p75 = pneg %p74
    $region27: #{tpu_custom_call.1} parent=1 // pred_check_branch
      %77 = sbr.rel (%p75) target = $region29
    $region28: #{tpu_custom_call.1} parent=1 // pred_region
      %vm78 = vcmask 7168
      %79 = vst.msk [vmem:[#allocation2] sm:$0xff] %vm78, 0.0
    $region29: #{tpu_custom_call.1} parent=1 // pred_fallthru
      _
    %v80 = vld [vmem:[#allocation3] sm:$0xff]
    %v81 = vld [vmem:[#allocation6] sm:$0xff]
    %v82 = vld [vmem:[#allocation8] sm:$0xff]
    %v83 = vsub.f32 %v82, %v81
    %v84 = vmul.f32 %v80, 2.0
    %v85 = vsub.f32 %v84, %v81
    %v86 = vsub.f32 %v85, %v82
    %v87 = vmul.f32 %v83, %v86
    %vm88 = vcmask 261120
    %v89 = vsel %vm88, %v87, 0.0
    %90 = vadd.xlane.f32.xlu0 %v89
    %v91 = vpop.xlane.xlu0 %90
    %v92 = vadd.f32 %v91, 0.1
    %v93 = vmax.f32 %v92, 0.0
    %v94 = vld [vmem:[#allocation2] sm:$0xff]
    %v95 = vadd.f32 %v94, %v93
    %vm96 = vcmask 7168
    %97 = vst.msk [vmem:[#allocation2] sm:$0xff] %vm96, %v95
    // Predicated region
    $region30: #{tpu_custom_call.1} parent=1 // pred_check
      %p98 = pneg %p74
    $region31: #{tpu_custom_call.1} parent=1 // pred_check_branch
      %100 = sbr.rel (%p98) target = $region33
    $region32: #{tpu_custom_call.1} parent=1 // pred_region
      %v101 = vld [vmem:[#allocation2] sm:$0xff]
      %v102 = vsel %vm96, %v101, 0.0
      %103 = vadd.xlane.f32.xlu0 %v102
      %v104 = vpop.xlane.xlu0 %103
      %v105 = vrot.slane %v104, 4
      %v106 = vadd.f32 %v104, %v105
      %v107 = vrot.slane %v106, 2
      %v108 = vadd.f32 %v106, %v107
      %v109 = vrot.slane %v108, 1
      %v110 = vadd.f32 %v108, %v109
      %s111 = vtos %v110
      %v112 = vstv %s111
      %v113 = vadd.f32 %v112, 0.0
      %114 = vst [vmem:[#allocation9] sm:$0xff] %v113
    $region33: #{tpu_custom_call.1} parent=1 // pred_fallthru
      _
    // Predicated region
    $region34: #{tpu_custom_call.1} parent=1 // pred_check
      _
    $region35: #{tpu_custom_call.1} parent=1 // pred_check_branch
      %116 = sbr.rel (0) target = $region37
    $region36: #{tpu_custom_call.1} parent=1 // pred_region
      %s118 = ssub.s32 128, 128
      %119 = vsyncadd [#allocation5], %s118
      %s121 = sshll.u32 [#allocation9], 4
      %s122 = int_to_ptr.vmem [resolvable:$true] %s121
      %124 = dma.vmem_to_hbm [thread:$0]  %s122, 128, %s3, [#allocation5]
    $region37: #{tpu_custom_call.1} parent=1 // pred_fallthru
      _
    // Predicated region
    $region38: #{tpu_custom_call.1} parent=1 // pred_check
      _
    $region39: #{tpu_custom_call.1} parent=1 // pred_check_branch
      %126 = sbr.rel (0) target = $region41
    $region40: #{tpu_custom_call.1} parent=1 // pred_region
      %127 = dma.done [#allocation5], 128
    $region41: #{tpu_custom_call.1} parent=1 // pred_fallthru
      _
    %128 = vsyncpa [#allocation4], 1
    %129 = vsyncpa [#allocation7], 1
    %130 = vsyncpa [#allocation5], 1

</llo_original>
